<compile_context>
chip_gen: v5e
topology: v5e:2x2
jax: 0.10.0
libtpu: 0.0.40
codegen_flags: <defaults>
</compile_context>

<pallas_src>
import functools

import jax
import jax.numpy as jnp
from jax.experimental import pallas as pl
from jax.experimental.pallas import tpu as pltpu


def _tv_kernel(x_ref, hmask_ref, wmask_ref, out_ref, acc_ref, *,
               W, HW, TB, BC, nblk_inner, do_h, do_w, mask_rows):
    """One grid step: a (TB, H*W) lane-dense tile of B*C image slices."""
    c = pl.program_id(0)          # TensorCore split (parallel axis)
    i = pl.program_id(1)          # reduction over row-blocks (arbitrary axis)

    @pl.when(i == 0)
    def _():
        acc_ref[...] = jnp.zeros_like(acc_ref)

    x = x_ref[...].astype(jnp.float32)          # (TB, HW)

    if mask_rows:
        # Only the globally-last block can hold padded (garbage) rows; zero
        # them so both diffs vanish there.  roll stays within a row, so valid
        # rows never see padded data.
        g = c * nblk_inner + i
        row = jax.lax.broadcasted_iota(jnp.int32, (TB, 1), 0)
        x = jnp.where(g * TB + row < BC, x, 0.0)

    contrib = None
    if do_h:
        # x_dn[f] = x[(f + W) % HW]: the pixel one image-row below.  Wrapped
        # positions (f >= HW - W) are zeroed by hmask (pre-scaled by 1/count_h).
        x_dn = pltpu.roll(x, shift=HW - W, axis=1)
        dh = x_dn - x
        contrib = dh * dh * hmask_ref[...]
    if do_w:
        # x_rt[f] = x[(f + 1) % HW]: the pixel to the right.  Row-wrap
        # positions (f % W == W-1, incl. f == HW-1) are zeroed by wmask
        # (pre-scaled by 1/count_w).
        x_rt = pltpu.roll(x, shift=HW - 1, axis=1)
        dw = x_rt - x
        cw = dw * dw * wmask_ref[...]
        contrib = cw if contrib is None else contrib + cw

    acc_ref[...] += contrib

    @pl.when(i == nblk_inner - 1)
    def _():
        out_ref[0, 0] = jnp.sum(acc_ref[...])


def tv_loss(x):
    """Exactly reproduces TVLoss.forward for NCHW input x."""
    B, C, H, W = x.shape
    do_h = H > 1
    do_w = W > 1

    if not do_h and not do_w:
        # Degenerate case: PyTorch divides by count_h == 0 -> nan.
        return 2.0 * (jnp.float32(0.0) / jnp.float32(0.0)) / B

    BC = B * C
    HW = H * W
    count_h = C * (H - 1) * W
    count_w = C * H * (W - 1)

    # Lane-dense view: contiguous row-major reshape, free in XLA.
    x_flat = x.reshape(BC, HW)

    # Validity masks for the rolled diffs, pre-scaled by 1/count so the kernel
    # keeps a single accumulator and the wrapper only multiplies by 2/B.
    idx = jnp.arange(HW, dtype=jnp.int32)
    if do_h:
        hmask = (idx < (HW - W)).astype(jnp.float32) * jnp.float32(1.0 / count_h)
    else:
        hmask = jnp.zeros((HW,), jnp.float32)
    if do_w:
        wmask = ((idx % W) != (W - 1)).astype(jnp.float32) * jnp.float32(1.0 / count_w)
    else:
        wmask = jnp.zeros((HW,), jnp.float32)
    hmask = hmask.reshape(1, HW)
    wmask = wmask.reshape(1, HW)

    # ---- Tile-size selection (dtype-aware, VMEM-budgeted). ------------------
    itemsize = x.dtype.itemsize
    row_bytes = HW * itemsize
    TARGET_TILE_BYTES = 4 * 1024 * 1024       # ~4 MiB of input per grid step
    rows_target = max(1, TARGET_TILE_BYTES // row_bytes)

    if BC <= rows_target:
        TB = BC
    else:
        # Prefer the largest multiple of 8 that divides BC (no tail masking).
        TB = 0
        for cand in range((rows_target // 8) * 8, 0, -8):
            if BC % cand == 0:
                TB = cand
                break
        if TB == 0:
            TB = max(8, (rows_target // 8) * 8)
    # TODO(synk): for very large H*W (8 rows >> 8 MiB) the block should also be
    # split along HW (with halo handling for the h-diff); here we only bump the
    # VMEM limit, so such shapes fail at compile time rather than silently.
    mask_rows = (BC % TB) != 0
    nblk = pl.cdiv(BC, TB)

    # v7x megacore: split the row-blocks across the two TensorCores when the
    # block count splits evenly; otherwise a size-1 parallel axis (no-op on
    # single-core chips either way).
    ncores = 2 if (nblk >= 2 and nblk % 2 == 0) else 1
    nblk_inner = nblk // ncores

    block_in_bytes = TB * HW * itemsize
    block_f32_bytes = TB * HW * 4
    # 2x double-buffered input + f32 accumulator + ~2 tiles of temporaries.
    vmem_limit = max(32 * 1024 * 1024,
                     2 * block_in_bytes + 3 * block_f32_bytes + (2 << 20))

    kernel = functools.partial(
        _tv_kernel, W=W, HW=HW, TB=TB, BC=BC, nblk_inner=nblk_inner,
        do_h=do_h, do_w=do_w, mask_rows=mask_rows)

    n_elem = BC * HW
    cost = pl.CostEstimate(
        flops=8 * n_elem,
        transcendentals=0,
        bytes_accessed=n_elem * itemsize + 2 * HW * 4 + ncores * 4,
    )

    partials = pl.pallas_call(
        kernel,
        out_shape=jax.ShapeDtypeStruct((ncores, 1), jnp.float32),
        grid_spec=pltpu.PrefetchScalarGridSpec(
            num_scalar_prefetch=0,
            grid=(ncores, nblk_inner),
            in_specs=[
                pl.BlockSpec((TB, HW),
                             lambda c, i, nbi=nblk_inner: (c * nbi + i, 0)),
                pl.BlockSpec((1, HW), lambda c, i: (0, 0)),
                pl.BlockSpec((1, HW), lambda c, i: (0, 0)),
            ],
            out_specs=pl.BlockSpec((1, 1), lambda c, i: (c, 0),
                                   memory_space=pltpu.SMEM),
            scratch_shapes=[pltpu.VMEM((TB, HW), jnp.float32)],
        ),
        compiler_params=pltpu.CompilerParams(
            dimension_semantics=("parallel", "arbitrary"),
            vmem_limit_bytes=int(vmem_limit)),
        cost_estimate=cost,
    )(x_flat, hmask, wmask)

    return 2.0 * jnp.sum(partials) / B


def tv_loss_ref(x):
    """Pure-JAX reference matching the PyTorch module."""
    B, C, H, W = x.shape
    if W == 1:
        count_h = C * (H - 1) * W
        h_tv = jnp.sum((x[:, :, 1:, :] - x[:, :, :-1, :]) ** 2)
        return 2.0 * (h_tv / count_h) / B
    if H == 1:
        count_w = C * H * (W - 1)
        w_tv = jnp.sum((x[:, :, :, 1:] - x[:, :, :, :-1]) ** 2)
        return 2.0 * (w_tv / count_w) / B
    count_h = C * (H - 1) * W
    count_w = C * H * (W - 1)
    h_tv = jnp.sum((x[:, :, 1:, :] - x[:, :, :-1, :]) ** 2)
    w_tv = jnp.sum((x[:, :, :, 1:] - x[:, :, :, :-1]) ** 2)
    return 2.0 * (h_tv / count_h + w_tv / count_w) / B


if __name__ == "__main__":
    key = jax.random.PRNGKey(0)
    x = jax.random.normal(key, (2, 4, 16, 16), dtype=jnp.float32)

    out = tv_loss(x)
    out = jax.block_until_ready(out)

    ref = tv_loss_ref(x)
    assert jnp.allclose(out, ref, rtol=1e-5, atol=1e-5), (out, ref)

    print("KERNEL_OK")
</pallas_src>

<mosaic_0001>
module attributes {stable_mosaic.version = 11 : i64} {
  func.func @_tv_kernel(%arg0: i32, %arg1: i32, %arg2: memref<8x256xf32, #tpu.memory_space<vmem>>, %arg3: memref<1x256xf32, #tpu.memory_space<vmem>>, %arg4: memref<1x256xf32, #tpu.memory_space<vmem>>, %arg5: memref<1x1xf32, #tpu.memory_space<smem>>, %arg6: memref<8x256xf32, #tpu.memory_space<vmem>>) attributes {dimension_semantics = [#tpu.dimension_semantics<parallel>, #tpu.dimension_semantics<arbitrary>], iteration_bounds = array<i64: 1, 1>, scalar_prefetch = 0 : i64, scratch_operands = 1 : i64, tpu.core_type = #tpu.core_type<tc>, window_params = [{transform_indices = @transform_0, window_bounds = array<i64: 8, 256>}, {pipeline_mode = #tpu.pipeline_mode<synchronous>, transform_indices = @transform_1, window_bounds = array<i64: 1, 256>}, {pipeline_mode = #tpu.pipeline_mode<synchronous>, transform_indices = @transform_2, window_bounds = array<i64: 1, 256>}, {transform_indices = @transform_3, window_bounds = array<i64: 1, 1>}]} {
    %c0_i32 = arith.constant 0 : i32
    %0 = arith.cmpi eq, %arg1, %c0_i32 : i32
    %1 = arith.extui %0 : i1 to i32
    %c0_i32_0 = arith.constant 0 : i32
    %2 = arith.cmpi ne, %1, %c0_i32_0 : i32
    scf.if %2 {
      %cst = arith.constant 0.000000e+00 : f32
      %23 = vector.broadcast %cst : f32 to vector<8x256xf32>
      %c0_12 = arith.constant 0 : index
      %c0_13 = arith.constant 0 : index
      %24 = vector.load %arg6[%c0_12, %c0_13] : memref<8x256xf32, #tpu.memory_space<vmem>>, vector<8x256xf32>
      tpu.vector_store %arg6[%c0_12, %c0_13], %23 {strides = array<i32>} : memref<8x256xf32, #tpu.memory_space<vmem>>, vector<8x256xf32>,
    } else {
    }
    %c0 = arith.constant 0 : index
    %c0_1 = arith.constant 0 : index
    %3 = vector.load %arg2[%c0, %c0_1] : memref<8x256xf32, #tpu.memory_space<vmem>>, vector<8x256xf32>
    %c240_i32 = arith.constant 240 : i32
    %4 = tpu.dynamic_rotate %3 by %c240_i32 dim 1 : vector<8x256xf32>, i32 -> vector<8x256xf32>
    %5 = arith.subf %4, %3 : vector<8x256xf32>
    %6 = arith.mulf %5, %5 : vector<8x256xf32>
    %c0_2 = arith.constant 0 : index
    %c0_3 = arith.constant 0 : index
    %7 = vector.load %arg3[%c0_2, %c0_3] : memref<1x256xf32, #tpu.memory_space<vmem>>, vector<1x256xf32>
    %8 = vector.broadcast %7 : vector<1x256xf32> to vector<8x256xf32>
    %9 = arith.mulf %6, %8 : vector<8x256xf32>
    %c255_i32 = arith.constant 255 : i32
    %10 = tpu.dynamic_rotate %3 by %c255_i32 dim 1 : vector<8x256xf32>, i32 -> vector<8x256xf32>
    %11 = arith.subf %10, %3 : vector<8x256xf32>
    %12 = arith.mulf %11, %11 : vector<8x256xf32>
    %c0_4 = arith.constant 0 : index
    %c0_5 = arith.constant 0 : index
    %13 = vector.load %arg4[%c0_4, %c0_5] : memref<1x256xf32, #tpu.memory_space<vmem>>, vector<1x256xf32>
    %14 = vector.broadcast %13 : vector<1x256xf32> to vector<8x256xf32>
    %15 = arith.mulf %12, %14 : vector<8x256xf32>
    %16 = arith.addf %9, %15 : vector<8x256xf32>
    %c0_6 = arith.constant 0 : index
    %c0_7 = arith.constant 0 : index
    %17 = vector.load %arg6[%c0_6, %c0_7] : memref<8x256xf32, #tpu.memory_space<vmem>>, vector<8x256xf32>
    %18 = arith.addf %17, %16 : vector<8x256xf32>
    %c0_8 = arith.constant 0 : index
    %c0_9 = arith.constant 0 : index
    %19 = vector.load %arg6[%c0_8, %c0_9] : memref<8x256xf32, #tpu.memory_space<vmem>>, vector<8x256xf32>
    tpu.vector_store %arg6[%c0_8, %c0_9], %18 {strides = array<i32>} : memref<8x256xf32, #tpu.memory_space<vmem>>, vector<8x256xf32>,
    %c0_i32_10 = arith.constant 0 : i32
    %20 = arith.cmpi eq, %arg1, %c0_i32_10 : i32
    %21 = arith.extui %20 : i1 to i32
    %c0_i32_11 = arith.constant 0 : i32
    %22 = arith.cmpi ne, %21, %c0_i32_11 : i32
    scf.if %22 {
      %c0_12 = arith.constant 0 : index
      %c0_13 = arith.constant 0 : index
      %23 = vector.load %arg6[%c0_12, %c0_13] : memref<8x256xf32, #tpu.memory_space<vmem>>, vector<8x256xf32>
      %24 = vector.shape_cast %23 : vector<8x256xf32> to vector<1x8x256xf32>
      %cst = arith.constant dense<0.000000e+00> : vector<1xf32>
      %25 = vector.multi_reduction <add>, %24, %cst [1, 2] : vector<1x8x256xf32> to vector<1xf32>
      %26 = vector.shape_cast %25 : vector<1xf32> to vector<1x1x1xf32>
      %27 = vector.extract %26[0, 0, 0] : f32 from vector<1x1x1xf32>
      %c0_14 = arith.constant 0 : index
      %c0_15 = arith.constant 0 : index
      %28 = memref.load %arg5[%c0_14, %c0_15] : memref<1x1xf32, #tpu.memory_space<smem>>
      memref.store %27, %arg5[%c0_14, %c0_15] : memref<1x1xf32, #tpu.memory_space<smem>>
    } else {
    }
    return
  }
  func.func @transform_0(%arg0: i32, %arg1: i32) -> (i32, i32) {
    %c1_i32 = arith.constant 1 : i32
    %0 = arith.muli %arg0, %c1_i32 : i32
    %1 = arith.addi %0, %arg1 : i32
    %c0_i32 = arith.constant 0 : i32
    %c0_i32_0 = arith.constant 0 : i32
    return %1, %c0_i32 : i32, i32
  }
  func.func @transform_1(%arg0: i32, %arg1: i32) -> (i32, i32) {
    %c0_i32 = arith.constant 0 : i32
    %c0_i32_0 = arith.constant 0 : i32
    %c0_i32_1 = arith.constant 0 : i32
    return %c0_i32, %c0_i32_0 : i32, i32
  }
  func.func @transform_2(%arg0: i32, %arg1: i32) -> (i32, i32) {
    %c0_i32 = arith.constant 0 : i32
    %c0_i32_0 = arith.constant 0 : i32
    %c0_i32_1 = arith.constant 0 : i32
    return %c0_i32, %c0_i32_0 : i32, i32
  }
  func.func @transform_3(%arg0: i32, %arg1: i32) -> (i32, i32) {
    %c0_i32 = arith.constant 0 : i32
    %c0_i32_0 = arith.constant 0 : i32
    return %arg0, %c0_i32 : i32, i32
  }
}

</mosaic_0001>

<llo_original>
// kernel: tpu_custom_call.1
$region0: #{tpu_custom_call.1}
  #allocation0 [shape = 'u32[]', space=smem, size = 0x4, offset = 0x4, fixed_abs, tag = 'smem constant byte address 0x4 - core index']
  #allocation1 [shape = 'u32[72,128]{1,0:T(1,128)}', space=vmem, size = 0x9000, scoped, tag = 'internal scratch']
  #allocation2 [shape = 'f32[8,256]{1,0:T(8,128)}', space=vmem, size = 0x2000, scoped, tag = 'scratch operand']
  %s0 = inlined_call_operand.hbm [shape: f32[8,256], index: 0, kind: input, shape index: {}]
  %s1 = inlined_call_operand.hbm [shape: f32[1,256], index: 1, kind: input, shape index: {}]
  %s2 = inlined_call_operand.hbm [shape: f32[1,256], index: 2, kind: input, shape index: {}]
  %s3 = inlined_call_operand.hbm [shape: f32[1,1], index: 3, kind: output, shape index: {}]
  %s4 = sld [smem:[#allocation0]]
  $region42: #{tpu_custom_call.1} parent=0
    _
  %s6 = ssub.s32 1, %s4
  %s7 = scalar_select 0, %s6, %s4
  $region1: #{tpu_custom_call.1} parent=0
    #allocation3 [shape = 'u8[8192]{0}', space=vmem, size = 0x2000, scoped, tag = 'input window, operand 0, single buffered']
    #allocation4 [shape = 's32[1]{0}', space=sflag, size = 0x4, scoped, tag = 'scoped memory for tpu_custom_call.1']
    #allocation5 [shape = 's32[1]{0}', space=sflag, size = 0x4, scoped, tag = 'scoped memory for tpu_custom_call.1']
    #allocation6 [shape = 'u8[1024]{0}', space=vmem, size = 0x400, scoped, tag = 'input window, operand 1, single buffered']
    #allocation7 [shape = 's32[1]{0}', space=sflag, size = 0x4, scoped, tag = 'scoped memory for tpu_custom_call.1']
    #allocation8 [shape = 'u8[1024]{0}', space=vmem, size = 0x400, scoped, tag = 'input window, operand 2, single buffered']
    #allocation9 [shape = 'u8[512]{0}', space=smem, size = 0x200, scoped, tag = 'output window, operand 0, single buffered']
    %8 = vsyncpa [#allocation4], 0
    %9 = vsyncpa [#allocation7], 0
    %10 = vsyncpa [#allocation5], 0
    // Predicated region
    $region2: #{tpu_custom_call.1} parent=1 // pred_check
      _
    $region3: #{tpu_custom_call.1} parent=1 // pred_check_branch
      %12 = sbr.rel (0) target = $region5
    $region4: #{tpu_custom_call.1} parent=1 // pred_region
      %s13 = sadd.s32 0, 0
      %15 = vsyncadd [#allocation4], 0
      %s16 = smul.addr %s13, 2
      %s17 = smul.addr %s16, 8
      %s18 = scalar_lea.hbm %s0, %s17
      %s20 = sshll.u32 %s18, 4
      %s21 = int_to_ptr.hbm [resolvable:$true] %s20
      %s22 = sshll.u32 [#allocation3], 4
      %s23 = int_to_ptr.vmem [resolvable:$true] %s22
      %25 = dma.hbm_to_vmem [thread:$0]  %s21, 256, %s23, [#allocation4]
    $region5: #{tpu_custom_call.1} parent=1 // pred_fallthru
      _
    // Predicated region
    $region6: #{tpu_custom_call.1} parent=1 // pred_check
      _
    $region7: #{tpu_custom_call.1} parent=1 // pred_check_branch
      %27 = sbr.rel (0) target = $region9
    $region8: #{tpu_custom_call.1} parent=1 // pred_region
      %29 = vsyncadd [#allocation7], 0
      %s31 = sshll.u32 %s1, 4
      %s32 = int_to_ptr.hbm [resolvable:$true] %s31
      %s33 = sshll.u32 [#allocation6], 4
      %s34 = int_to_ptr.vmem [resolvable:$true] %s33
      %36 = dma.hbm_to_vmem [thread:$0]  %s32, 32, %s34, [#allocation7]
    $region9: #{tpu_custom_call.1} parent=1 // pred_fallthru
      _
    // Predicated region
    $region10: #{tpu_custom_call.1} parent=1 // pred_check
      _
    $region11: #{tpu_custom_call.1} parent=1 // pred_check_branch
      %38 = sbr.rel (0) target = $region13
    $region12: #{tpu_custom_call.1} parent=1 // pred_region
      %40 = vsyncadd [#allocation7], 0
      %s42 = sshll.u32 %s2, 4
      %s43 = int_to_ptr.hbm [resolvable:$true] %s42
      %s44 = sshll.u32 [#allocation8], 4
      %s45 = int_to_ptr.vmem [resolvable:$true] %s44
      %47 = dma.hbm_to_vmem [thread:$0]  %s43, 32, %s45, [#allocation7]
    $region13: #{tpu_custom_call.1} parent=1 // pred_fallthru
      _
    // Predicated region
    $region14: #{tpu_custom_call.1} parent=1 // pred_check
      _
    $region15: #{tpu_custom_call.1} parent=1 // pred_check_branch
      %49 = sbr.rel (0) target = $region17
    $region16: #{tpu_custom_call.1} parent=1 // pred_region
      %51 = dma.done [#allocation4], 256
    $region17: #{tpu_custom_call.1} parent=1 // pred_fallthru
      _
    // Predicated region
    $region18: #{tpu_custom_call.1} parent=1 // pred_check
      _
    $region19: #{tpu_custom_call.1} parent=1 // pred_check_branch
      %53 = sbr.rel (0) target = $region21
    $region20: #{tpu_custom_call.1} parent=1 // pred_region
      %55 = dma.done [#allocation7], 32
    $region21: #{tpu_custom_call.1} parent=1 // pred_fallthru
      _
    // Predicated region
    $region22: #{tpu_custom_call.1} parent=1 // pred_check
      _
    $region23: #{tpu_custom_call.1} parent=1 // pred_check_branch
      %57 = sbr.rel (0) target = $region25
    $region24: #{tpu_custom_call.1} parent=1 // pred_region
      %59 = dma.done [#allocation7], 32
    $region25: #{tpu_custom_call.1} parent=1 // pred_fallthru
      _
    %s60 = sadd.s32 0, 0
    %p61 = scmp.eq.s32.totalorder 0, 0
    // Predicated region
    $region26: #{tpu_custom_call.1} parent=1 // pred_check
      %p62 = pneg %p61
    $region27: #{tpu_custom_call.1} parent=1 // pred_check_branch
      %64 = sbr.rel (%p62) target = $region29
    $region28: #{tpu_custom_call.1} parent=1 // pred_region
      %65 = vst [vmem:[#allocation2] sm:$0xff] 0.0
      %66 = vst [vmem:[#allocation2 + $0x8] sm:$0xff] 0.0
    $region29: #{tpu_custom_call.1} parent=1 // pred_fallthru
      _
    %v67 = vld [vmem:[#allocation3] sm:$0xff]
    %v68 = vld [vmem:[#allocation3 + $0x8] sm:$0xff]
    %69 = vrot.lane.b32.xlu0 %v67, 112
    %v70 = vpop.permute.xlu0 %69
    %71 = vrot.lane.b32.xlu0 %v68, 112
    %v72 = vpop.permute.xlu0 %71
    %v73 = vlaneseq
    %v74 = vand.u32 %v73, 127
    %vm75 = vcmp.lt.s32.totalorder %v74, 112
    %v76 = vsel %vm75, %v70, %v72
    %v77 = vsel %vm75, %v72, %v70
    %v78 = vsub.f32 %v76, %v67
    %v79 = vsub.f32 %v77, %v68
    %v80 = vmul.f32 %v78, %v78
    %v81 = vmul.f32 %v79, %v79
    %v82 = vld [vmem:[#allocation6] sm:$0x3]
    %v84 = vperm.slane %v82, 0
    %v85 = vperm.slane %v82, 1
    %v88 = vmul.f32 %v80, %v84
    %v89 = vmul.f32 %v81, %v85
    %90 = vrot.lane.b32.xlu0 %v67, 127
    %v91 = vpop.permute.xlu0 %90
    %92 = vrot.lane.b32.xlu0 %v68, 127
    %v93 = vpop.permute.xlu0 %92
    %vm94 = vcmp.lt.s32.totalorder %v74, 127
    %v95 = vsel %vm94, %v91, %v93
    %v96 = vsel %vm94, %v93, %v91
    %v97 = vsub.f32 %v95, %v67
    %v98 = vsub.f32 %v96, %v68
    %v99 = vmul.f32 %v97, %v97
    %v100 = vmul.f32 %v98, %v98
    %v101 = vld [vmem:[#allocation8] sm:$0x3]
    %v103 = vperm.slane %v101, 0
    %v104 = vperm.slane %v101, 1
    %v107 = vmul.f32 %v99, %v103
    %v108 = vmul.f32 %v100, %v104
    %v109 = vadd.f32 %v88, %v107
    %v110 = vadd.f32 %v89, %v108
    %v111 = vld [vmem:[#allocation2] sm:$0xff]
    %v112 = vld [vmem:[#allocation2 + $0x8] sm:$0xff]
    %v113 = vadd.f32 %v111, %v109
    %v114 = vadd.f32 %v112, %v110
    %115 = vst [vmem:[#allocation2] sm:$0xff] %v113
    %116 = vst [vmem:[#allocation2 + $0x8] sm:$0xff] %v114
    // Predicated region
    $region30: #{tpu_custom_call.1} parent=1 // pred_check
      %p117 = pneg %p61
    $region31: #{tpu_custom_call.1} parent=1 // pred_check_branch
      %119 = sbr.rel (%p117) target = $region33
    $region32: #{tpu_custom_call.1} parent=1 // pred_region
      %v120 = vld [vmem:[#allocation2] sm:$0xff]
      %v121 = vld [vmem:[#allocation2 + $0x8] sm:$0xff]
      %v122 = vadd.f32 %v120, %v121
      %123 = vadd.xlane.f32.xlu0 %v122
      %v124 = vpop.xlane.xlu0 %123
      %v125 = vrot.slane %v124, 4
      %v126 = vadd.f32 %v124, %v125
      %v127 = vrot.slane %v126, 2
      %v128 = vadd.f32 %v126, %v127
      %v129 = vrot.slane %v128, 1
      %v130 = vadd.f32 %v128, %v129
      %s131 = vtos %v130
      %s132 = scalar_lea.smem [#allocation9], 0
      %133 = sst [smem:[%s132]] %s131
    $region33: #{tpu_custom_call.1} parent=1 // pred_fallthru
      _
    // Predicated region
    $region34: #{tpu_custom_call.1} parent=1 // pred_check
      _
    $region35: #{tpu_custom_call.1} parent=1 // pred_check_branch
      %135 = sbr.rel (0) target = $region37
    $region36: #{tpu_custom_call.1} parent=1 // pred_region
      %137 = vsyncadd [#allocation5], 0
      %s139 = sshll.u32 %s3, 4
      %s140 = int_to_ptr.hbm [resolvable:$true] %s139
      %142 = dma.smem_to_hbm [#allocation9], 16, %s140, [#allocation5]
    $region37: #{tpu_custom_call.1} parent=1 // pred_fallthru
      _
    // Predicated region
    $region38: #{tpu_custom_call.1} parent=1 // pred_check
      _
    $region39: #{tpu_custom_call.1} parent=1 // pred_check_branch
      %144 = sbr.rel (0) target = $region41
    $region40: #{tpu_custom_call.1} parent=1 // pred_region
      %146 = dma.done [#allocation5], 16
    $region41: #{tpu_custom_call.1} parent=1 // pred_fallthru
      _
    %147 = sfence
    %148 = vsyncpa [#allocation4], 1
    %149 = vsyncpa [#allocation7], 1
    %150 = vsyncpa [#allocation5], 1

</llo_original>
